<compile_context>
chip_gen: v7x
topology: tpu7x:2x2x1
jax: 0.10.0
libtpu: 0.0.40
codegen_flags: <defaults>
</compile_context>

<pallas_src>
import functools

import jax
import jax.numpy as jnp
from jax import lax
from jax.experimental import pallas as pl
from jax.experimental.pallas import tpu as pltpu

LANES = 128
SUBLANES = 8


def _elemwise_terms(x, y):
    """Stable per-element BCE-with-logits and sigmoid (f32 in/out). Shared exp chain."""
    e = jnp.exp(-jnp.abs(x))                    # shared between sigmoid and BCE
    r = 1.0 / (1.0 + e)
    sig = jnp.where(x >= 0, r, e * r)           # == sigmoid(x)
    bce = jnp.maximum(x, 0.0) - x * y + jnp.log1p(e)
    return bce, sig


def _dice_bce_partial_kernel(x_ref, y_ref, out_ref, *,
                             rows_bulk: int, tile_rows: int, needs_mask: bool):
    """Per-block partial sums: out block (1, 4, 8, 128) = [bce, inter, sig, tgt]."""
    x = x_ref[...].astype(jnp.float32)
    y = y_ref[...].astype(jnp.float32)

    def reduce_to_tile(v):
        # (tr, 128) -> (8, 128) vreg-aligned partials (pure VALU when tr % 8 == 0).
        r = v.shape[0]
        if r % SUBLANES == 0:
            return jnp.sum(v.reshape(-1, SUBLANES, LANES), axis=0)
        # Small full-extent blocks (r < 8 or not a multiple of 8): lane sums in row 0.
        s = jnp.sum(v, axis=0, keepdims=True)                       # (1, 128)
        row = lax.broadcasted_iota(jnp.int32, (SUBLANES, LANES), 0)
        return jnp.where(row == 0, jnp.broadcast_to(s, (SUBLANES, LANES)), 0.0)

    def emit(valid):
        bce, sig = _elemwise_terms(x, y)
        ty = y
        if valid is not None:
            zero = jnp.zeros_like(x)
            bce = jnp.where(valid, bce, zero)
            sig = jnp.where(valid, sig, zero)
            ty = jnp.where(valid, y, zero)
        out_ref[0, 0] = reduce_to_tile(bce)
        out_ref[0, 1] = reduce_to_tile(sig * ty)
        out_ref[0, 2] = reduce_to_tile(sig)
        out_ref[0, 3] = reduce_to_tile(ty)

    if needs_mask:
        i = pl.program_id(0)
        last = pl.num_programs(0) - 1

        @pl.when(i < last)
        def _full_tile():
            emit(None)

        @pl.when(i == last)
        def _partial_tile():
            # Only the last tile can hold OOB (garbage) rows; row-based mask
            # (no int32 element-offset overflow for large tensors).
            row = lax.broadcasted_iota(jnp.int32, x.shape, 0)
            emit((i * tile_rows + row) < rows_bulk)
    else:
        emit(None)


def dice_bce_loss(inputs, targets, *, tile_rows=8192):
    """DiceBCELoss forward: BCEWithLogitsLoss(mean) + dice term. Returns scalar f32.

    `inputs` (logits) and `targets` may be any identical shape / float dtype
    (bf16 is fine -- promotion to f32 happens inside the kernel).
    """
    assert inputs.shape == targets.shape
    n = int(inputs.size)
    inv_n = 1.0 / float(n)

    x_flat = inputs.reshape(-1)
    y_flat = targets.reshape(-1)

    rows_bulk = n // LANES
    rem = n - rows_bulk * LANES

    sums = jnp.zeros((4,), jnp.float32)   # [bce_sum, inter, sig_sum, tgt_sum]

    if rows_bulk > 0:
        n_bulk = rows_bulk * LANES
        if rem:
            # TODO(synk): a zero-copy path for numel % 128 != 0 (pl.ANY ref +
            # manual DMA over the flat array) would avoid materializing this
            # prefix slice; the aligned common case below is already copy-free.
            xb = x_flat[:n_bulk]
            yb = y_flat[:n_bulk]
        else:
            xb, yb = x_flat, y_flat
        x2 = xb.reshape(rows_bulk, LANES)
        y2 = yb.reshape(rows_bulk, LANES)

        # --- tile-size selection (big blocks, but VMEM-safe on v7x/v5e) ---
        tr = min(int(tile_rows), rows_bulk)
        if tr < rows_bulk and tr % SUBLANES:
            tr = max(SUBLANES, (tr // SUBLANES) * SUBLANES)   # keep (8, .) aligned
        row_bytes = LANES * (x2.dtype.itemsize + y2.dtype.itemsize)
        # double-buffered inputs (2 bufs * tr * row_bytes) must stay <= ~44 MiB
        max_rows = max(SUBLANES, ((44 << 20) // (2 * row_bytes)) // SUBLANES * SUBLANES)
        if tr > max_rows:
            tr = max_rows

        grid = pl.cdiv(rows_bulk, tr)
        needs_mask = (rows_bulk % tr) != 0

        vmem_limit = int(min(max(2 * tr * row_bytes + (4 << 20), 32 << 20), 48 << 20))

        kernel = functools.partial(_dice_bce_partial_kernel,
                                   rows_bulk=rows_bulk, tile_rows=tr,
                                   needs_mask=needs_mask)

        partials = pl.pallas_call(
            kernel,
            out_shape=jax.ShapeDtypeStruct((grid, 4, SUBLANES, LANES), jnp.float32),
            grid_spec=pltpu.PrefetchScalarGridSpec(
                num_scalar_prefetch=0,
                grid=(grid,),
                in_specs=[pl.BlockSpec((tr, LANES), lambda i: (i, 0)),
                          pl.BlockSpec((tr, LANES), lambda i: (i, 0))],
                out_specs=pl.BlockSpec((1, 4, SUBLANES, LANES),
                                       lambda i: (i, 0, 0, 0)),
            ),
            compiler_params=pltpu.CompilerParams(
                dimension_semantics=("parallel",),     # megacore-shardable on v7x
                vmem_limit_bytes=vmem_limit),
        )(x2, y2)

        sums = sums + jnp.sum(partials, axis=(0, 2, 3))

    if rem:
        # <128-element tail handled in plain JAX (no pad / no extra bulk traffic).
        xt = x_flat[n - rem:].astype(jnp.float32)
        yt = y_flat[n - rem:].astype(jnp.float32)
        bce_t, sig_t = _elemwise_terms(xt, yt)
        sums = sums + jnp.stack([jnp.sum(bce_t), jnp.sum(sig_t * yt),
                                 jnp.sum(sig_t), jnp.sum(yt)])

    bce_mean = sums[0] * inv_n
    dice_loss = 1.0 - 2.0 * sums[1] / (sums[2] + sums[3] + 1e-6)
    return bce_mean + dice_loss


def _reference(inputs, targets):
    x = inputs.astype(jnp.float32)
    y = targets.astype(jnp.float32)
    sig = jax.nn.sigmoid(x)
    inter = jnp.sum(sig * y)
    dice = 1.0 - 2.0 * inter / (jnp.sum(sig) + jnp.sum(y) + 1e-6)
    bce = jnp.mean(jnp.maximum(x, 0.0) - x * y + jnp.log1p(jnp.exp(-jnp.abs(x))))
    return bce + dice


if __name__ == "__main__":
    key = jax.random.PRNGKey(0)

    # main check: NCHW segmentation-style logits / {0,1} targets (128-aligned)
    k1, k2 = jax.random.split(key)
    B, C, H, W = 2, 4, 16, 16
    inputs = jax.random.normal(k1, (B, C, H, W), dtype=jnp.float32)
    targets = (jax.random.uniform(k2, (B, C, H, W)) > 0.5).astype(jnp.float32)
    loss = jax.block_until_ready(dice_bce_loss(inputs, targets))
    ref = _reference(inputs, targets)
    assert jnp.allclose(loss, ref, atol=1e-5, rtol=1e-5), (loss, ref)

    # multi-tile parallel grid + masked (OOB rows in last tile) path: 12 rows, tr=8
    k3, k4 = jax.random.split(k1)
    inputs2 = jax.random.normal(k3, (2, 3, 16, 16), dtype=jnp.float32)
    targets2 = (jax.random.uniform(k4, (2, 3, 16, 16)) > 0.5).astype(jnp.float32)
    loss2 = jax.block_until_ready(dice_bce_loss(inputs2, targets2, tile_rows=8))
    ref2 = _reference(inputs2, targets2)
    assert jnp.allclose(loss2, ref2, atol=1e-5, rtol=1e-5), (loss2, ref2)

    # non-multiple-of-128 size: kernel on the aligned bulk + plain-JAX tail
    k5, k6 = jax.random.split(k3)
    inputs3 = jax.random.normal(k5, (2, 3, 7, 9), dtype=jnp.float32)
    targets3 = (jax.random.uniform(k6, (2, 3, 7, 9)) > 0.5).astype(jnp.float32)
    loss3 = jax.block_until_ready(dice_bce_loss(inputs3, targets3))
    ref3 = _reference(inputs3, targets3)
    assert jnp.allclose(loss3, ref3, atol=1e-5, rtol=1e-5), (loss3, ref3)

    print("KERNEL_OK")
</pallas_src>

<mosaic_0001>
module attributes {stable_mosaic.version = 11 : i64} {
  func.func @_dice_bce_partial_kernel(%arg0: i32, %arg1: memref<16x128xf32, #tpu.memory_space<vmem>>, %arg2: memref<16x128xf32, #tpu.memory_space<vmem>>, %arg3: memref<1x4x8x128xf32, #tpu.memory_space<vmem>>) attributes {dimension_semantics = [#tpu.dimension_semantics<parallel>], iteration_bounds = array<i64: 1>, scalar_prefetch = 0 : i64, scratch_operands = 0 : i64, tpu.core_type = #tpu.core_type<tc>, window_params = [{transform_indices = @transform_0, window_bounds = array<i64: 16, 128>}, {transform_indices = @transform_1, window_bounds = array<i64: 16, 128>}, {transform_indices = @transform_2, window_bounds = array<i64: 1, 4, 8, 128>}]} {
    %c0 = arith.constant 0 : index
    %c0_0 = arith.constant 0 : index
    %0 = vector.load %arg1[%c0, %c0_0] : memref<16x128xf32, #tpu.memory_space<vmem>>, vector<16x128xf32>
    %c0_1 = arith.constant 0 : index
    %c0_2 = arith.constant 0 : index
    %1 = vector.load %arg2[%c0_1, %c0_2] : memref<16x128xf32, #tpu.memory_space<vmem>>, vector<16x128xf32>
    %2 = math.absf %0 : vector<16x128xf32>
    %cst = arith.constant 0.000000e+00 : f32
    %3 = vector.broadcast %cst : f32 to vector<16x128xf32>
    %4 = arith.subf %3, %2 : vector<16x128xf32>
    %5 = math.exp %4 : vector<16x128xf32>
    %cst_3 = arith.constant 1.000000e+00 : f32
    %6 = vector.broadcast %cst_3 : f32 to vector<16x128xf32>
    %7 = arith.addf %6, %5 : vector<16x128xf32>
    %cst_4 = arith.constant 1.000000e+00 : f32
    %8 = vector.broadcast %cst_4 : f32 to vector<16x128xf32>
    %9 = arith.divf %8, %7 : vector<16x128xf32>
    %cst_5 = arith.constant 0.000000e+00 : f32
    %10 = vector.broadcast %cst_5 : f32 to vector<16x128xf32>
    %11 = arith.cmpf oge, %0, %10 : vector<16x128xf32>
    %12 = arith.mulf %5, %9 : vector<16x128xf32>
    %13 = arith.select %11, %9, %12 : vector<16x128xi1>, vector<16x128xf32>
    %cst_6 = arith.constant 0.000000e+00 : f32
    %14 = vector.broadcast %cst_6 : f32 to vector<16x128xf32>
    %15 = arith.maximumf %0, %14 : vector<16x128xf32>
    %16 = arith.mulf %0, %1 : vector<16x128xf32>
    %17 = arith.subf %15, %16 : vector<16x128xf32>
    %18 = math.log1p %5 : vector<16x128xf32>
    %19 = arith.addf %17, %18 : vector<16x128xf32>
    %20 = vector.shape_cast %19 : vector<16x128xf32> to vector<2x8x128xf32>
    %cst_7 = arith.constant dense<0.000000e+00> : vector<8x128xf32>
    %21 = vector.multi_reduction <add>, %20, %cst_7 [0] : vector<2x8x128xf32> to vector<8x128xf32>
    %c0_8 = arith.constant 0 : index
    %c0_9 = arith.constant 0 : index
    %c0_10 = arith.constant 0 : index
    %c0_11 = arith.constant 0 : index
    %22 = vector.load %arg3[%c0_8, %c0_9, %c0_10, %c0_11] : memref<1x4x8x128xf32, #tpu.memory_space<vmem>>, vector<1x1x8x128xf32>
    %23 = vector.shape_cast %22 : vector<1x1x8x128xf32> to vector<8x128xf32>
    %24 = vector.shape_cast %21 : vector<8x128xf32> to vector<1x1x8x128xf32>
    tpu.vector_store %arg3[%c0_8, %c0_9, %c0_10, %c0_11], %24 {strides = array<i32>} : memref<1x4x8x128xf32, #tpu.memory_space<vmem>>, vector<1x1x8x128xf32>,
    %25 = arith.mulf %13, %1 : vector<16x128xf32>
    %26 = vector.shape_cast %25 : vector<16x128xf32> to vector<2x8x128xf32>
    %cst_12 = arith.constant dense<0.000000e+00> : vector<8x128xf32>
    %27 = vector.multi_reduction <add>, %26, %cst_12 [0] : vector<2x8x128xf32> to vector<8x128xf32>
    %c0_13 = arith.constant 0 : index
    %c1 = arith.constant 1 : index
    %c0_14 = arith.constant 0 : index
    %c0_15 = arith.constant 0 : index
    %28 = vector.load %arg3[%c0_13, %c1, %c0_14, %c0_15] : memref<1x4x8x128xf32, #tpu.memory_space<vmem>>, vector<1x1x8x128xf32>
    %29 = vector.shape_cast %28 : vector<1x1x8x128xf32> to vector<8x128xf32>
    %30 = vector.shape_cast %27 : vector<8x128xf32> to vector<1x1x8x128xf32>
    tpu.vector_store %arg3[%c0_13, %c1, %c0_14, %c0_15], %30 {strides = array<i32>} : memref<1x4x8x128xf32, #tpu.memory_space<vmem>>, vector<1x1x8x128xf32>,
    %31 = vector.shape_cast %13 : vector<16x128xf32> to vector<2x8x128xf32>
    %cst_16 = arith.constant dense<0.000000e+00> : vector<8x128xf32>
    %32 = vector.multi_reduction <add>, %31, %cst_16 [0] : vector<2x8x128xf32> to vector<8x128xf32>
    %c0_17 = arith.constant 0 : index
    %c2 = arith.constant 2 : index
    %c0_18 = arith.constant 0 : index
    %c0_19 = arith.constant 0 : index
    %33 = vector.load %arg3[%c0_17, %c2, %c0_18, %c0_19] : memref<1x4x8x128xf32, #tpu.memory_space<vmem>>, vector<1x1x8x128xf32>
    %34 = vector.shape_cast %33 : vector<1x1x8x128xf32> to vector<8x128xf32>
    %35 = vector.shape_cast %32 : vector<8x128xf32> to vector<1x1x8x128xf32>
    tpu.vector_store %arg3[%c0_17, %c2, %c0_18, %c0_19], %35 {strides = array<i32>} : memref<1x4x8x128xf32, #tpu.memory_space<vmem>>, vector<1x1x8x128xf32>,
    %36 = vector.shape_cast %1 : vector<16x128xf32> to vector<2x8x128xf32>
    %cst_20 = arith.constant dense<0.000000e+00> : vector<8x128xf32>
    %37 = vector.multi_reduction <add>, %36, %cst_20 [0] : vector<2x8x128xf32> to vector<8x128xf32>
    %c0_21 = arith.constant 0 : index
    %c3 = arith.constant 3 : index
    %c0_22 = arith.constant 0 : index
    %c0_23 = arith.constant 0 : index
    %38 = vector.load %arg3[%c0_21, %c3, %c0_22, %c0_23] : memref<1x4x8x128xf32, #tpu.memory_space<vmem>>, vector<1x1x8x128xf32>
    %39 = vector.shape_cast %38 : vector<1x1x8x128xf32> to vector<8x128xf32>
    %40 = vector.shape_cast %37 : vector<8x128xf32> to vector<1x1x8x128xf32>
    tpu.vector_store %arg3[%c0_21, %c3, %c0_22, %c0_23], %40 {strides = array<i32>} : memref<1x4x8x128xf32, #tpu.memory_space<vmem>>, vector<1x1x8x128xf32>,
    return
  }
  func.func @transform_0(%arg0: i32) -> (i32, i32) {
    %c0_i32 = arith.constant 0 : i32
    %c0_i32_0 = arith.constant 0 : i32
    return %arg0, %c0_i32 : i32, i32
  }
  func.func @transform_1(%arg0: i32) -> (i32, i32) {
    %c0_i32 = arith.constant 0 : i32
    %c0_i32_0 = arith.constant 0 : i32
    return %arg0, %c0_i32 : i32, i32
  }
  func.func @transform_2(%arg0: i32) -> (i32, i32, i32, i32) {
    %c0_i32 = arith.constant 0 : i32
    %c0_i32_0 = arith.constant 0 : i32
    %c0_i32_1 = arith.constant 0 : i32
    %c0_i32_2 = arith.constant 0 : i32
    return %arg0, %c0_i32, %c0_i32_0, %c0_i32_1 : i32, i32, i32, i32
  }
}

</mosaic_0001>

<llo_original>
// kernel: tpu_custom_call.1
$region0: #{tpu_custom_call.1}
  #allocation0 [shape = 'u32[]', space=smem, size = 0x4, offset = 0x4, fixed_abs, tag = 'smem constant byte address 0x4 - core index']
  #allocation1 [shape = 'u32[144,128]{1,0:T(1,128)}', space=vmem, size = 0x12000, scoped, tag = 'internal scratch']
  %s0 = inlined_call_operand.hbm [shape: f32[16,128], index: 0, kind: input, shape index: {}]
  %s1 = inlined_call_operand.hbm [shape: f32[16,128], index: 1, kind: input, shape index: {}]
  %s2 = inlined_call_operand.hbm [shape: f32[1,4,8,128], index: 2, kind: output, shape index: {}]
  %s3 = sld [smem:[#allocation0]]
  $region26: #{tpu_custom_call.1} parent=0
    _
  %s5 = ssub.s32 1, %s3
  %s6 = scalar_select 0, %s5, %s3
  $region1: #{tpu_custom_call.1} parent=0
    #allocation2 [shape = 'u8[8192]{0}', space=vmem, size = 0x2000, scoped, tag = 'input window, operand 0, single buffered']
    #allocation3 [shape = 's32[1]{0}', space=sflag, size = 0x4, scoped, tag = 'scoped memory for tpu_custom_call.1']
    #allocation4 [shape = 's32[1]{0}', space=sflag, size = 0x4, scoped, tag = 'scoped memory for tpu_custom_call.1']
    #allocation5 [shape = 'u8[8192]{0}', space=vmem, size = 0x2000, scoped, tag = 'input window, operand 1, single buffered']
    #allocation6 [shape = 's32[1]{0}', space=sflag, size = 0x4, scoped, tag = 'scoped memory for tpu_custom_call.1']
    #allocation7 [shape = 'u8[16384]{0}', space=vmem, size = 0x4000, scoped, tag = 'output window, operand 0, single buffered']
    %7 = vsyncpa [#allocation3], 0
    %8 = vsyncpa [#allocation6], 0
    %9 = vsyncpa [#allocation4], 0
    // Predicated region
    $region2: #{tpu_custom_call.1} parent=1 // pred_check
      _
    $region3: #{tpu_custom_call.1} parent=1 // pred_check_branch
      %11 = sbr.rel (0) target = $region5
    $region4: #{tpu_custom_call.1} parent=1 // pred_region
      %s13 = ssub.s32 256, 256
      %14 = vsyncadd [#allocation3], %s13
      %s15 = sshll.u32 [#allocation2], 4
      %s16 = int_to_ptr.vmem [resolvable:$true] %s15
      %21 = dma.hbm_to_vmem [thread:$0]  %s0, 256, %s16, [#allocation3], 128, 128, 8
    $region5: #{tpu_custom_call.1} parent=1 // pred_fallthru
      _
    // Predicated region
    $region6: #{tpu_custom_call.1} parent=1 // pred_check
      _
    $region7: #{tpu_custom_call.1} parent=1 // pred_check_branch
      %23 = sbr.rel (0) target = $region9
    $region8: #{tpu_custom_call.1} parent=1 // pred_region
      %s25 = ssub.s32 256, 256
      %26 = vsyncadd [#allocation6], %s25
      %s27 = sshll.u32 [#allocation5], 4
      %s28 = int_to_ptr.vmem [resolvable:$true] %s27
      %33 = dma.hbm_to_vmem [thread:$0]  %s1, 256, %s28, [#allocation6], 128, 128, 8
    $region9: #{tpu_custom_call.1} parent=1 // pred_fallthru
      _
    // Predicated region
    $region10: #{tpu_custom_call.1} parent=1 // pred_check
      _
    $region11: #{tpu_custom_call.1} parent=1 // pred_check_branch
      %35 = sbr.rel (0) target = $region13
    $region12: #{tpu_custom_call.1} parent=1 // pred_region
      %36 = dma.done [#allocation3], 256
    $region13: #{tpu_custom_call.1} parent=1 // pred_fallthru
      _
    // Predicated region
    $region14: #{tpu_custom_call.1} parent=1 // pred_check
      _
    $region15: #{tpu_custom_call.1} parent=1 // pred_check_branch
      %38 = sbr.rel (0) target = $region17
    $region16: #{tpu_custom_call.1} parent=1 // pred_region
      %39 = dma.done [#allocation6], 256
    $region17: #{tpu_custom_call.1} parent=1 // pred_fallthru
      _
    %v40 = vld [vmem:[#allocation2] sm:$0xff]
    %v41 = vld [vmem:[#allocation2 + $0x8] sm:$0xff]
    %v42 = vld [vmem:[#allocation5] sm:$0xff]
    %v43 = vld [vmem:[#allocation5 + $0x8] sm:$0xff]
    %v44 = vand.u32 2147483647, %v40
    %v45 = vand.u32 2147483647, %v41
    %v46 = vsub.f32 0.0, %v44
    %v47 = vsub.f32 0.0, %v45
    %v48 = vmul.f32 %v46, 1.442695
    %v49 = vpow.pop %v48
    %v50 = vmul.f32 %v47, 1.442695
    %v51 = vpow.pop %v50
    %v52 = vadd.f32 %v49, 1.0
    %v53 = vadd.f32 %v51, 1.0
    %v54 = vrcp.pop %v52
    %v55 = vmul.f32 1.0, %v54
    %v56 = vrcp.pop %v53
    %v57 = vmul.f32 1.0, %v56
    %vm58 = vcmp.ge.f32.partialorder %v40, 0.0
    %vm59 = vcmp.ge.f32.partialorder %v41, 0.0
    %v60 = vmul.f32 %v49, %v55
    %v61 = vmul.f32 %v51, %v57
    %v62 = vsel %vm58, %v55, %v60
    %v63 = vsel %vm59, %v57, %v61
    %v64 = vmax.f32 %v40, 0.0
    %v65 = vmax.f32 %v41, 0.0
    %v66 = vmul.f32 %v40, %v42
    %v67 = vmul.f32 %v41, %v43
    %v68 = vsub.f32 %v64, %v66
    %v69 = vsub.f32 %v65, %v67
    %v70 = vadd.f32 %v49, 1.0
    %v71 = vlog2.pop %v70
    %v72 = vmul.f32 %v71, 0.6931472
    %v73 = vmul.f32 -0.5, %v49
    %v74 = vadd.f32 %v73, 1.0
    %v75 = vmul.f32 %v74, %v49
    %v76 = vand.u32 2147483647, %v49
    %vm77 = vcmp.lt.f32.partialorder %v76, 0.0004427343
    %v78 = vsel %vm77, %v75, %v72
    %v79 = vadd.f32 %v51, 1.0
    %v80 = vlog2.pop %v79
    %v81 = vmul.f32 %v80, 0.6931472
    %v82 = vmul.f32 -0.5, %v51
    %v83 = vadd.f32 %v82, 1.0
    %v84 = vmul.f32 %v83, %v51
    %v85 = vand.u32 2147483647, %v51
    %vm86 = vcmp.lt.f32.partialorder %v85, 0.0004427343
    %v87 = vsel %vm86, %v84, %v81
    %v88 = vadd.f32 %v68, %v78
    %v89 = vadd.f32 %v69, %v87
    %v90 = vadd.f32 %v88, %v89
    %91 = vst [vmem:[#allocation7] sm:$0xff] %v90
    %v92 = vmul.f32 %v62, %v42
    %v93 = vmul.f32 %v63, %v43
    %v94 = vadd.f32 %v92, %v93
    %s95 = scalar_lea.vmem [#allocation7], 8
    %96 = vst [vmem:[%s95] sm:$0xff] %v94
    %v97 = vadd.f32 %v62, %v63
    %s98 = scalar_lea.vmem [#allocation7], 16
    %99 = vst [vmem:[%s98] sm:$0xff] %v97
    %v100 = vadd.f32 %v42, %v43
    %s101 = scalar_lea.vmem [#allocation7], 24
    %102 = vst [vmem:[%s101] sm:$0xff] %v100
    // Predicated region
    $region18: #{tpu_custom_call.1} parent=1 // pred_check
      _
    $region19: #{tpu_custom_call.1} parent=1 // pred_check_branch
      %104 = sbr.rel (0) target = $region21
    $region20: #{tpu_custom_call.1} parent=1 // pred_region
      %s106 = ssub.s32 512, 512
      %107 = vsyncadd [#allocation4], %s106
      %s108 = sshll.u32 [#allocation7], 4
      %s109 = int_to_ptr.vmem [resolvable:$true] %s108
      %114 = dma.vmem_to_hbm [thread:$0]  %s109, 512, %s2, [#allocation4], 128, 128, 8
    $region21: #{tpu_custom_call.1} parent=1 // pred_fallthru
      _
    // Predicated region
    $region22: #{tpu_custom_call.1} parent=1 // pred_check
      _
    $region23: #{tpu_custom_call.1} parent=1 // pred_check_branch
      %116 = sbr.rel (0) target = $region25
    $region24: #{tpu_custom_call.1} parent=1 // pred_region
      %117 = dma.done [#allocation4], 512
    $region25: #{tpu_custom_call.1} parent=1 // pred_fallthru
      _
    %118 = vsyncpa [#allocation3], 1
    %119 = vsyncpa [#allocation6], 1
    %120 = vsyncpa [#allocation4], 1

</llo_original>
